<compile_context>
chip_gen: v6e
topology: v6e:2x2x1
jax: 0.10.0
libtpu: 0.0.40
codegen_flags: <defaults>
</compile_context>

<pallas_src>
import jax
import jax.numpy as jnp
from jax.experimental import pallas as pl
from jax.experimental.pallas import tpu as pltpu

EPS = 1e-5
_LANE = 128


# --------------------------------------------------------------------------- sizing
def _vmem_capacity_bytes():
    try:
        info = pltpu.get_tpu_info()
        cap = getattr(info, "vmem_capacity_bytes", None)
        if cap:
            return int(cap)
    except Exception:
        pass
    return 64 * 1024 * 1024  # conservative default: v7x per-TensorCore VMEM


def _channel_tiles(C):
    tiles = [t for t in range(8, C + 1, 8) if C % t == 0]
    if not tiles:
        tiles = [C]  # C < 8 or not a multiple of 8: single full-channel tile (legal: full dim)
    return tiles


def _block_cost_bytes(n, tc, hw, itemsize):
    io = n * tc * hw * itemsize   # one input / output VMEM buffer
    f32 = n * tc * hw * 4         # f32 upcast / centered temporary
    return 4 * io + 2 * f32       # double-buffered in + out, plus ~2 block temps


def _choose_tc_single_pass(C, N, HWp, itemsize, budget):
    fits = [t for t in _channel_tiles(C)
            if _block_cost_bytes(N, t, HWp, itemsize) <= budget]
    if not fits:
        return None
    # Prefer >=4 grid steps (2 TensorCores x double buffering on v7x), then >=2, then any.
    for min_steps in (4, 2, 1):
        pref = [t for t in fits if C // t >= min_steps]
        if pref:
            return max(pref)
    return max(fits)


def _choose_two_pass_tiles(C, N, HWp, itemsize, budget):
    tc = min(_channel_tiles(C))
    k = HWp // _LANE  # HWp is always a multiple of 128 here
    thw = _LANE
    for d in range(1, k + 1):
        if k % d == 0:
            cand = _LANE * d
            if _block_cost_bytes(N, tc, cand, itemsize) <= budget:
                thw = max(thw, cand)
    # TODO(synk): extremely large batch N could still overshoot at thw=128; N-tiling not added.
    return tc, thw


# --------------------------------------------------------------------------- kernels
def _affine_relu(xv, scale, shift, out_dtype):
    """relu(x * scale + shift); bf16 inputs use native bf16 VALU, else f32."""
    if xv.dtype == jnp.bfloat16:
        y = xv * scale.astype(jnp.bfloat16) + shift.astype(jnp.bfloat16)
    else:
        y = xv.astype(jnp.float32) * scale + shift
    return jnp.maximum(y, 0).astype(out_dtype)


def _make_single_pass_kernel(tc, C, hw_real, hw_pad, inv_count, eps):
    def kernel(x_ref, g_ref, b_ref, o_ref):
        xv = x_ref[...]                                   # (N, tc, HWp), input dtype
        xf = xv.astype(jnp.float32)
        # Per-channel mean over (N, HW): lane reduce then fold N (pads are zero).
        s = jnp.sum(jnp.sum(xf, axis=2, keepdims=True), axis=0, keepdims=True)
        mean = s * inv_count                              # (1, tc, 1)
        xc = xf - mean
        if hw_pad != hw_real:                             # mask padded lanes out of the variance
            lane = jax.lax.broadcasted_iota(jnp.int32, (1, 1, hw_pad), 2)
            xc = jnp.where(lane < hw_real, xc, 0.0)
        ss = jnp.sum(jnp.sum(xc * xc, axis=2, keepdims=True), axis=0, keepdims=True)
        var = ss * inv_count                              # biased, centered, f32

        if tc == C:
            g = g_ref[...]
            b = b_ref[...]
        else:
            c0 = pl.multiple_of(pl.program_id(0) * tc, tc)
            g = g_ref[:, pl.ds(c0, tc), :]
            b = b_ref[:, pl.ds(c0, tc), :]

        scale = g * jax.lax.rsqrt(var + eps)              # fold mean into the affine
        shift = b - mean * scale
        o_ref[...] = _affine_relu(xv, scale, shift, o_ref.dtype)
    return kernel


def _stats_kernel(x_ref, sum_ref, ssq_ref):
    # Reduction axis (HW tiles) is grid axis 1 (last, "arbitrary"); outputs stay resident.
    @pl.when(pl.program_id(1) == 0)
    def _():
        sum_ref[...] = jnp.zeros_like(sum_ref)
        ssq_ref[...] = jnp.zeros_like(ssq_ref)
    xf = x_ref[...].astype(jnp.float32)
    sum_ref[...] += jnp.sum(jnp.sum(xf, axis=2, keepdims=True), axis=0, keepdims=True)
    ssq_ref[...] += jnp.sum(jnp.sum(xf * xf, axis=2, keepdims=True), axis=0, keepdims=True)


def _make_norm_kernel(tc, C):
    def kernel(scale_ref, shift_ref, x_ref, o_ref):
        if tc == C:
            sc = scale_ref[...]
            sh = shift_ref[...]
        else:
            c0 = pl.multiple_of(pl.program_id(0) * tc, tc)
            sc = scale_ref[:, pl.ds(c0, tc), :]
            sh = shift_ref[:, pl.ds(c0, tc), :]
        o_ref[...] = _affine_relu(x_ref[...], sc, sh, o_ref.dtype)
    return kernel


# --------------------------------------------------------------------------- wrapper
def post_activation(x, gamma, beta, *, eps=EPS,
                    debug_force_two_pass=False, debug_block_budget=None):
    """Fused BatchNorm2d (training-mode batch stats, affine) + ReLU on NCHW input."""
    N, C, H, W = x.shape
    HW = H * W
    itemsize = jnp.dtype(x.dtype).itemsize

    # Generation-aware VMEM budget (v7x: 64 MiB -> 48 MiB limit; v5e/v6e: 128 MiB -> 96 MiB).
    vmem_cap = _vmem_capacity_bytes()
    vmem_limit = min(int(vmem_cap * 0.75), 100 * 1024 * 1024)
    budget = int(vmem_limit * 0.8)
    if debug_block_budget is not None:
        budget = min(budget, int(debug_block_budget))

    # Layout: (N, C, H*W) via free metadata reshape; pad H*W to a lane-dense multiple of 128.
    x3 = x.reshape(N, C, HW)
    HWp = ((HW + _LANE - 1) // _LANE) * _LANE
    if HWp != HW:
        x3 = jnp.pad(x3, ((0, 0), (0, 0), (0, HWp - HW)))
    g3 = gamma.astype(jnp.float32).reshape(1, C, 1)
    b3 = beta.astype(jnp.float32).reshape(1, C, 1)
    inv_count = 1.0 / float(N * HW)

    tc = None if debug_force_two_pass else _choose_tc_single_pass(C, N, HWp, itemsize, budget)

    if tc is not None:
        # ---- single-pass: one HBM read + one write per element --------------------
        kernel = _make_single_pass_kernel(tc, C, HW, HWp, inv_count, eps)
        out3 = pl.pallas_call(
            kernel,
            out_shape=jax.ShapeDtypeStruct((N, C, HWp), x.dtype),
            grid=(C // tc,),
            in_specs=[
                pl.BlockSpec((N, tc, HWp), lambda i: (0, i, 0)),
                pl.BlockSpec((1, C, 1), lambda i: (0, 0, 0)),   # gamma: single untiled block
                pl.BlockSpec((1, C, 1), lambda i: (0, 0, 0)),   # beta:  single untiled block
            ],
            out_specs=pl.BlockSpec((N, tc, HWp), lambda i: (0, i, 0)),
            compiler_params=pltpu.CompilerParams(
                dimension_semantics=("parallel",),
                vmem_limit_bytes=vmem_limit,
            ),
        )(x3, g3, b3)
    else:
        # ---- two-pass fallback for activations too large for any single-pass tile --
        tc2, thw = _choose_two_pass_tiles(C, N, HWp, itemsize, budget)
        # Pass 1: per-channel sum / sum-of-squares (zero pads contribute nothing).
        sums, ssqs = pl.pallas_call(
            _stats_kernel,
            out_shape=(jax.ShapeDtypeStruct((1, C, 1), jnp.float32),
                       jax.ShapeDtypeStruct((1, C, 1), jnp.float32)),
            grid=(C // tc2, HWp // thw),
            in_specs=[pl.BlockSpec((N, tc2, thw), lambda i, j: (0, i, j))],
            out_specs=(pl.BlockSpec((1, tc2, 1), lambda i, j: (0, i, 0)),
                       pl.BlockSpec((1, tc2, 1), lambda i, j: (0, i, 0))),
            compiler_params=pltpu.CompilerParams(
                dimension_semantics=("parallel", "arbitrary"),
                vmem_limit_bytes=vmem_limit,
            ),
        )(x3)
        mean = sums * inv_count
        var = jnp.maximum(ssqs * inv_count - mean * mean, 0.0)
        scale = g3 * jax.lax.rsqrt(var + eps)
        shift = b3 - mean * scale
        # Pass 2: elementwise normalize + ReLU.
        out3 = pl.pallas_call(
            _make_norm_kernel(tc2, C),
            out_shape=jax.ShapeDtypeStruct((N, C, HWp), x.dtype),
            grid=(C // tc2, HWp // thw),
            in_specs=[
                pl.BlockSpec((1, C, 1), lambda i, j: (0, 0, 0)),
                pl.BlockSpec((1, C, 1), lambda i, j: (0, 0, 0)),
                pl.BlockSpec((N, tc2, thw), lambda i, j: (0, i, j)),
            ],
            out_specs=pl.BlockSpec((N, tc2, thw), lambda i, j: (0, i, j)),
            compiler_params=pltpu.CompilerParams(
                dimension_semantics=("parallel", "parallel"),
                vmem_limit_bytes=vmem_limit,
            ),
        )(scale, shift, x3)

    if HWp != HW:
        out3 = out3[:, :, :HW]
    return out3.reshape(N, C, H, W)


# --------------------------------------------------------------------------- test
if __name__ == "__main__":
    key = jax.random.PRNGKey(0)
    kx, kg, kb = jax.random.split(key, 3)

    def ref_fn(x, gamma, beta):
        mean = jnp.mean(x, axis=(0, 2, 3), keepdims=True)
        var = jnp.mean((x - mean) ** 2, axis=(0, 2, 3), keepdims=True)
        C = x.shape[1]
        return jnp.maximum(
            (x - mean) * jax.lax.rsqrt(var + EPS)
            * gamma.reshape(1, C, 1, 1) + beta.reshape(1, C, 1, 1), 0.0)

    # Main case: lane-dense H*W (32*32=1024), channel-parallel grid of 8-channel tiles.
    N, C, H, W = 2, 16, 32, 32
    x = jax.random.normal(kx, (N, C, H, W), jnp.float32) * 2.0 + 0.5
    gamma = jax.random.uniform(kg, (C,), jnp.float32, minval=0.5, maxval=1.5)
    beta = jax.random.normal(kb, (C,), jnp.float32) * 0.1

    out = jax.block_until_ready(jax.jit(post_activation)(x, gamma, beta))
    ref = ref_fn(x, gamma, beta)
    assert out.shape == (N, C, H, W), out.shape
    assert bool(jnp.all(jnp.isfinite(out)))
    assert bool(jnp.allclose(out, ref, atol=1e-4, rtol=1e-4)), \
        float(jnp.max(jnp.abs(out - ref)))

    # Non-lane-aligned spatial map (7x7=49): exercises pad-to-128 + masked-variance path.
    N2, C2, H2, W2 = 2, 8, 7, 7
    x2 = jax.random.normal(kx, (N2, C2, H2, W2), jnp.float32) + 0.25
    g2 = jnp.full((C2,), 1.3, jnp.float32)
    b2 = jnp.full((C2,), -0.05, jnp.float32)
    out2 = jax.block_until_ready(jax.jit(post_activation)(x2, g2, b2))
    assert bool(jnp.allclose(out2, ref_fn(x2, g2, b2), atol=1e-4, rtol=1e-4))

    # Large-activation fallback: forced two-pass (stats accumulation + normalize) structure.
    fwd_two = jax.jit(lambda a, g, b: post_activation(
        a, g, b, debug_force_two_pass=True, debug_block_budget=256 * 1024))
    out3 = jax.block_until_ready(fwd_two(x, gamma, beta))
    assert bool(jnp.allclose(out3, ref, atol=1e-4, rtol=1e-4)), \
        float(jnp.max(jnp.abs(out3 - ref)))

    print("KERNEL_OK")
</pallas_src>

<mosaic_0001>
module attributes {stable_mosaic.version = 11 : i64} {
  func.func @kernel(%arg0: i32, %arg1: memref<2x8x1024xf32, #tpu.memory_space<vmem>>, %arg2: memref<1x16x1xf32, #tpu.memory_space<vmem>>, %arg3: memref<1x16x1xf32, #tpu.memory_space<vmem>>, %arg4: memref<2x8x1024xf32, #tpu.memory_space<vmem>>) attributes {dimension_semantics = [#tpu.dimension_semantics<parallel>], iteration_bounds = array<i64: 2>, scalar_prefetch = 0 : i64, scratch_operands = 0 : i64, tpu.core_type = #tpu.core_type<tc>, window_params = [{transform_indices = @transform_0, window_bounds = array<i64: 2, 8, 1024>}, {pipeline_mode = #tpu.pipeline_mode<synchronous>, transform_indices = @transform_1, window_bounds = array<i64: 1, 16, 1>}, {pipeline_mode = #tpu.pipeline_mode<synchronous>, transform_indices = @transform_2, window_bounds = array<i64: 1, 16, 1>}, {transform_indices = @transform_3, window_bounds = array<i64: 2, 8, 1024>}]} {
    %c0 = arith.constant 0 : index
    %c0_0 = arith.constant 0 : index
    %c0_1 = arith.constant 0 : index
    %0 = vector.load %arg1[%c0, %c0_0, %c0_1] : memref<2x8x1024xf32, #tpu.memory_space<vmem>>, vector<2x8x1024xf32>
    %cst = arith.constant dense<0.000000e+00> : vector<2x8xf32>
    %1 = vector.multi_reduction <add>, %0, %cst [2] : vector<2x8x1024xf32> to vector<2x8xf32>
    %2 = vector.shape_cast %1 : vector<2x8xf32> to vector<2x8x1xf32>
    %cst_2 = arith.constant dense<0.000000e+00> : vector<8x1xf32>
    %3 = vector.multi_reduction <add>, %2, %cst_2 [0] : vector<2x8x1xf32> to vector<8x1xf32>
    %4 = vector.shape_cast %3 : vector<8x1xf32> to vector<1x8x1xf32>
    %cst_3 = arith.constant 4.8828125E-4 : f32
    %5 = vector.broadcast %cst_3 : f32 to vector<1x8x1xf32>
    %6 = arith.mulf %4, %5 : vector<1x8x1xf32>
    %7 = vector.broadcast %6 : vector<1x8x1xf32> to vector<2x8x1024xf32>
    %8 = arith.subf %0, %7 : vector<2x8x1024xf32>
    %9 = arith.mulf %8, %8 : vector<2x8x1024xf32>
    %cst_4 = arith.constant dense<0.000000e+00> : vector<2x8xf32>
    %10 = vector.multi_reduction <add>, %9, %cst_4 [2] : vector<2x8x1024xf32> to vector<2x8xf32>
    %11 = vector.shape_cast %10 : vector<2x8xf32> to vector<2x8x1xf32>
    %cst_5 = arith.constant dense<0.000000e+00> : vector<8x1xf32>
    %12 = vector.multi_reduction <add>, %11, %cst_5 [0] : vector<2x8x1xf32> to vector<8x1xf32>
    %13 = vector.shape_cast %12 : vector<8x1xf32> to vector<1x8x1xf32>
    %cst_6 = arith.constant 4.8828125E-4 : f32
    %14 = vector.broadcast %cst_6 : f32 to vector<1x8x1xf32>
    %15 = arith.mulf %13, %14 : vector<1x8x1xf32>
    %c8_i32 = arith.constant 8 : i32
    %16 = arith.muli %arg0, %c8_i32 : i32
    %17 = tpu.assume_multiple %16, 8 : i32
    %c0_7 = arith.constant 0 : index
    %18 = arith.index_cast %17 : i32 to index
    %c0_8 = arith.constant 0 : index
    %19 = vector.load %arg2[%c0_7, %18, %c0_8] : memref<1x16x1xf32, #tpu.memory_space<vmem>>, vector<1x8x1xf32>
    %c0_9 = arith.constant 0 : index
    %20 = arith.index_cast %17 : i32 to index
    %c0_10 = arith.constant 0 : index
    %21 = vector.load %arg3[%c0_9, %20, %c0_10] : memref<1x16x1xf32, #tpu.memory_space<vmem>>, vector<1x8x1xf32>
    %cst_11 = arith.constant 9.99999974E-6 : f32
    %22 = vector.broadcast %cst_11 : f32 to vector<1x8x1xf32>
    %23 = arith.addf %15, %22 : vector<1x8x1xf32>
    %24 = math.rsqrt %23 : vector<1x8x1xf32>
    %25 = arith.mulf %19, %24 : vector<1x8x1xf32>
    %26 = arith.mulf %6, %25 : vector<1x8x1xf32>
    %27 = arith.subf %21, %26 : vector<1x8x1xf32>
    %28 = vector.broadcast %25 : vector<1x8x1xf32> to vector<2x8x1024xf32>
    %29 = arith.mulf %0, %28 : vector<2x8x1024xf32>
    %30 = vector.broadcast %27 : vector<1x8x1xf32> to vector<2x8x1024xf32>
    %31 = arith.addf %29, %30 : vector<2x8x1024xf32>
    %cst_12 = arith.constant 0.000000e+00 : f32
    %32 = vector.broadcast %cst_12 : f32 to vector<2x8x1024xf32>
    %33 = arith.maximumf %31, %32 : vector<2x8x1024xf32>
    %c0_13 = arith.constant 0 : index
    %c0_14 = arith.constant 0 : index
    %c0_15 = arith.constant 0 : index
    %34 = vector.load %arg4[%c0_13, %c0_14, %c0_15] : memref<2x8x1024xf32, #tpu.memory_space<vmem>>, vector<2x8x1024xf32>
    tpu.vector_store %arg4[%c0_13, %c0_14, %c0_15], %33 {strides = array<i32>} : memref<2x8x1024xf32, #tpu.memory_space<vmem>>, vector<2x8x1024xf32>,
    return
  }
  func.func @transform_0(%arg0: i32) -> (i32, i32, i32) {
    %c0_i32 = arith.constant 0 : i32
    %c0_i32_0 = arith.constant 0 : i32
    %c0_i32_1 = arith.constant 0 : i32
    return %c0_i32, %arg0, %c0_i32_0 : i32, i32, i32
  }
  func.func @transform_1(%arg0: i32) -> (i32, i32, i32) {
    %c0_i32 = arith.constant 0 : i32
    %c0_i32_0 = arith.constant 0 : i32
    %c0_i32_1 = arith.constant 0 : i32
    %c0_i32_2 = arith.constant 0 : i32
    return %c0_i32, %c0_i32_0, %c0_i32_1 : i32, i32, i32
  }
  func.func @transform_2(%arg0: i32) -> (i32, i32, i32) {
    %c0_i32 = arith.constant 0 : i32
    %c0_i32_0 = arith.constant 0 : i32
    %c0_i32_1 = arith.constant 0 : i32
    %c0_i32_2 = arith.constant 0 : i32
    return %c0_i32, %c0_i32_0, %c0_i32_1 : i32, i32, i32
  }
  func.func @transform_3(%arg0: i32) -> (i32, i32, i32) {
    %c0_i32 = arith.constant 0 : i32
    %c0_i32_0 = arith.constant 0 : i32
    %c0_i32_1 = arith.constant 0 : i32
    return %c0_i32, %arg0, %c0_i32_0 : i32, i32, i32
  }
}

</mosaic_0001>

<llo_original>
// kernel: post_activation.1
$region0: #{post_activation.1}
  #allocation0 [shape = 'u32[]', space=smem, size = 0x4, offset = 0x4, fixed_abs, tag = 'smem constant byte address 0x4 - core index']
  #allocation1 [shape = 'u32[144,128]{1,0:T(1,128)}', space=vmem, size = 0x12000, scoped, tag = 'internal scratch']
  %s0 = inlined_call_operand.vmem [shape: f32[2,16,1024], index: 0, kind: input, shape index: {}]
  %s1 = inlined_call_operand.vmem [shape: f32[1,16,1], index: 1, kind: input, shape index: {}]
  %s2 = inlined_call_operand.vmem [shape: f32[1,16,1], index: 2, kind: input, shape index: {}]
  %s3 = inlined_call_operand.vmem [shape: f32[2,16,1024], index: 3, kind: output, shape index: {}]
  %s4 = sld [smem:[#allocation0]]
  $region87: #{post_activation.1} parent=0
    _
  %s6 = ssub.s32 1, %s4
  %s7 = scalar_select 0, %s6, %s4
  $region1: #{post_activation.1} parent=0
    #allocation2 [shape = 'u8[131072]{0}', space=vmem, size = 0x20000, scoped, tag = 'input window, operand 0']
    #allocation3 [shape = 'u8[131072]{0}', space=vmem, size = 0x20000, scoped, tag = 'output window, operand 0']
    loop: start=0, step=1, limit=4
    $region2: #{post_activation.1} parent=1 // loop_pre_header
      _
    $region3: #{post_activation.1} parent=1 // loop_header
      %s9 = sphi 0, %s13
      %p10 = scmp.ge.s32.totalorder %s9, 4
      %s19 = sphi 0, %s21
      %s22 = sphi 0, %s19
      %s23 = sphi 0, %s22
      %s39 = sphi 0, %s23
      %s43 = sphi 0, %s43
      %s45 = sphi 0, %s43
      %s46 = sphi 0, %s45
      %s60 = sphi 0, %s46
      %s64 = sphi 0, %s64
      %s66 = sphi 0, %s64
      %s67 = sphi 0, %s66
      %s81 = sphi 0, %s67
      %s87 = sphi 0, %s89
      %s90 = sphi 0, %s87
      %s91 = sphi 0, %s90
      %s107 = sphi 0, %s91
    $region4: #{post_activation.1} parent=1 // loop_header_branch
      %12 = sbr.rel (%p10) target = $region8
    $region5: #{post_activation.1} parent=1 // loop_body
      %s14 = ssub.s32 %s9, 1
      %s15 = ssub.s32 %s9, 2
      %s16 = sadd.s32 %s9, 1
      %s17 = ssub.s32 %s9, %s16
      %p18 = scmp.eq.s32.totalorder %s17, 0
      %s20 = sadd.s32 %s19, 1
      %s21 = scalar_select %p18, %s19, %s20
      %p24 = pneg %p18
      %p25 = scmp.eq.s32.totalorder %s9, 1
      %p26 = por %p24, %p25
      %p27 = scmp.ne.s32.totalorder %s19, %s22
      %p28 = scmp.eq.s32.totalorder %s9, 0
      %p29 = por %p27, %p28
      %p30 = scmp.ne.s32.totalorder %s19, %s22
      %p31 = scmp.eq.s32.totalorder %s14, 1
      %p32 = por %p30, %p31
      %p33 = scmp.ne.s32.totalorder %s22, %s23
      %p34 = scmp.eq.s32.totalorder %s14, 0
      %p35 = por %p33, %p34
      %p36 = scmp.ne.s32.totalorder %s22, %s23
      %p37 = scmp.eq.s32.totalorder %s15, 1
      %p38 = por %p36, %p37
      %p40 = scmp.ne.s32.totalorder %s23, %s39
      %p41 = scmp.eq.s32.totalorder %s15, 0
      %p42 = por %p40, %p41
      %s44 = sadd.s32 %s43, 1
      %p47 = scmp.eq.s32.totalorder %s9, 1
      %p48 = scmp.ne.s32.totalorder %s43, %s45
      %p49 = scmp.eq.s32.totalorder %s9, 0
      %p50 = por %p48, %p49
      %p51 = scmp.ne.s32.totalorder %s43, %s45
      %p52 = scmp.eq.s32.totalorder %s14, 1
      %p53 = por %p51, %p52
      %p54 = scmp.ne.s32.totalorder %s45, %s46
      %p55 = scmp.eq.s32.totalorder %s14, 0
      %p56 = por %p54, %p55
      %p57 = scmp.ne.s32.totalorder %s45, %s46
      %p58 = scmp.eq.s32.totalorder %s15, 1
      %p59 = por %p57, %p58
      %p61 = scmp.ne.s32.totalorder %s46, %s60
      %p62 = scmp.eq.s32.totalorder %s15, 0
      %p63 = por %p61, %p62
      %s65 = sadd.s32 %s64, 1
      %p68 = scmp.eq.s32.totalorder %s9, 1
      %p69 = scmp.ne.s32.totalorder %s64, %s66
      %p70 = scmp.eq.s32.totalorder %s9, 0
      %p71 = por %p69, %p70
      %p72 = scmp.ne.s32.totalorder %s64, %s66
      %p73 = scmp.eq.s32.totalorder %s14, 1
      %p74 = por %p72, %p73
      %p75 = scmp.ne.s32.totalorder %s66, %s67
      %p76 = scmp.eq.s32.totalorder %s14, 0
      %p77 = por %p75, %p76
      %p78 = scmp.ne.s32.totalorder %s66, %s67
      %p79 = scmp.eq.s32.totalorder %s15, 1
      %p80 = por %p78, %p79
      %p82 = scmp.ne.s32.totalorder %s67, %s81
      %p83 = scmp.eq.s32.totalorder %s15, 0
      %p84 = por %p82, %p83
      %s85 = ssub.s32 %s9, %s16
      %p86 = scmp.eq.s32.totalorder %s85, 0
      %s88 = sadd.s32 %s87, 1
      %s89 = scalar_select %p86, %s87, %s88
      %p92 = pneg %p86
      %p93 = scmp.eq.s32.totalorder %s9, 1
      %p94 = por %p92, %p93
      %p95 = scmp.ne.s32.totalorder %s87, %s90
      %p96 = scmp.eq.s32.totalorder %s9, 0
      %p97 = por %p95, %p96
      %p98 = scmp.ne.s32.totalorder %s87, %s90
      %p99 = scmp.eq.s32.totalorder %s14, 1
      %p100 = por %p98, %p99
      %p101 = scmp.ne.s32.totalorder %s90, %s91
      %p102 = scmp.eq.s32.totalorder %s14, 0
      %p103 = por %p101, %p102
      %p104 = scmp.ne.s32.totalorder %s90, %s91
      %p105 = scmp.eq.s32.totalorder %s15, 1
      %p106 = por %p104, %p105
      %p108 = scmp.ne.s32.totalorder %s91, %s107
      %p109 = scmp.eq.s32.totalorder %s15, 0
      %p110 = por %p108, %p109
      %p111 = scmp.le.s32.totalorder 1, %s9
      %p112 = scmp.lt.s32.totalorder %s9, 3
      %p113 = pnand %p111, %p112
      %p114 = pneg %p113
      // Predicated region
      $region9: #{post_activation.1} parent=5 // pred_check
        _
      $region10: #{post_activation.1} parent=5 // pred_check_branch
        %116 = sbr.rel (%p113) target = $region12
      $region11: #{post_activation.1} parent=5 // pred_region
        %s117 = ssub.s32 %s9, 1
        // Predicated region
        $region13: #{post_activation.1} parent=11 // pred_check
          %p118 = pneg %p56
        $region14: #{post_activation.1} parent=11 // pred_check_branch
          %120 = sbr.rel (%p118) target = $region16
        $region15: #{post_activation.1} parent=11 // pred_region
          _
        $region16: #{post_activation.1} parent=11 // pred_fallthru
          _
        // Predicated region
        $region17: #{post_activation.1} parent=11 // pred_check
          %p121 = pneg %p77
        $region18: #{post_activation.1} parent=11 // pred_check_branch
          %123 = sbr.rel (%p121) target = $region20
        $region19: #{post_activation.1} parent=11 // pred_region
          _
        $region20: #{post_activation.1} parent=11 // pred_fallthru
          _
      $region12: #{post_activation.1} parent=5 // pred_fallthru
        _
      %p124 = scmp.lt.s32.totalorder %s9, 2
      // Predicated region
      $region21: #{post_activation.1} parent=5 // pred_check
        %p125 = pneg %p124
      $region22: #{post_activation.1} parent=5 // pred_check_branch
        %127 = sbr.rel (%p125) target = $region24
      $region23: #{post_activation.1} parent=5 // pred_region
        // Predicated region
        $region25: #{post_activation.1} parent=23 // pred_check
          %p128 = pneg %p29
        $region26: #{post_activation.1} parent=23 // pred_check_branch
          %130 = sbr.rel (%p128) target = $region28
        $region27: #{post_activation.1} parent=23 // pred_region
          %s131 = sand.u32 %s19, 1
          %s132 = sand.u32 %s19, 1
          %s133 = smul.addr %s132, 128
          %s134 = scalar_lea.vmem [#allocation2], %s133
          %s135 = smul.addr %s9, 8
          %s136 = smul.addr %s135, 8
          %s137 = scalar_lea.vmem %s0, %s136
          // Predicated region
          $region29: #{post_activation.1} parent=27 // pred_check
            _
          $region30: #{post_activation.1} parent=27 // pred_check_branch
            %139 = sbr.rel (0) target = $region32
          $region31: #{post_activation.1} parent=27 // pred_region
            // Predicated region
            $region33: #{post_activation.1} parent=31 // pred_check
              _
            $region34: #{post_activation.1} parent=31 // pred_check_branch
              %141 = sbr.rel (0) target = $region36
            $region35: #{post_activation.1} parent=31 // pred_region
              loop: start=0, step=1, limit=1
              $region37: #{post_activation.1} parent=35 // loop_pre_header
                _
              $region38: #{post_activation.1} parent=35 // loop_header
                %s143 = sphi 0, %s147
                %p144 = scmp.ge.s32.totalorder %s143, 1
                %s148 = sphi %s137, %s137
                %s149 = sphi %s134, %s134
              $region39: #{post_activation.1} parent=35 // loop_header_branch
                %146 = sbr.rel (%p144) target = $region43
              $region40: #{post_activation.1} parent=35 // loop_body
                %v150 = vld [vmem:[%s148] sm:$0xff]
                %151 = vst [vmem:[%s149] sm:$0xff] %v150
                %v152 = vld [vmem:[%s148 + $0x8] sm:$0xff]
                %153 = vst [vmem:[%s149 + $0x8] sm:$0xff] %v152
                %v154 = vld [vmem:[%s148 + $0x10] sm:$0xff]
                %155 = vst [vmem:[%s149 + $0x10] sm:$0xff] %v154
                %v156 = vld [vmem:[%s148 + $0x18] sm:$0xff]
                %157 = vst [vmem:[%s149 + $0x18] sm:$0xff] %v156
                %v158 = vld [vmem:[%s148 + $0x20] sm:$0xff]
                %159 = vst [vmem:[%s149 + $0x20] sm:$0xff] %v158
                %v160 = vld [vmem:[%s148 + $0x28] sm:$0xff]
                %161 = vst [vmem:[%s149 + $0x28] sm:$0xff] %v160
                %v162 = vld [vmem:[%s148 + $0x30] sm:$0xff]
                %163 = vst [vmem:[%s149 + $0x30] sm:$0xff] %v162
                %v164 = vld [vmem:[%s148 + $0x38] sm:$0xff]
                %165 = vst [vmem:[%s149 + $0x38] sm:$0xff] %v164
                %v166 = vld [vmem:[%s148 + $0x80] sm:$0xff]
                %167 = vst [vmem:[%s149 + $0x40] sm:$0xff] %v166
                %v168 = vld [vmem:[%s148 + $0x88] sm:$0xff]
                %169 = vst [vmem:[%s149 + $0x48] sm:$0xff] %v168
                %v170 = vld [vmem:[%s148 + $0x90] sm:$0xff]
                %171 = vst [vmem:[%s149 + $0x50] sm:$0xff] %v170
                %v172 = vld [vmem:[%s148 + $0x98] sm:$0xff]
                %173 = vst [vmem:[%s149 + $0x58] sm:$0xff] %v172
                %v174 = vld [vmem:[%s148 + $0xa0] sm:$0xff]
                %175 = vst [vmem:[%s149 + $0x60] sm:$0xff] %v174
                %v176 = vld [vmem:[%s148 + $0xa8] sm:$0xff]
                %177 = vst [vmem:[%s149 + $0x68] sm:$0xff] %v176
                %v178 = vld [vmem:[%s148 + $0xb0] sm:$0xff]
                %179 = vst [vmem:[%s149 + $0x70] sm:$0xff] %v178
                %v180 = vld [vmem:[%s148 + $0xb8] sm:$0xff]
                %181 = vst [vmem:[%s149 + $0x78] sm:$0xff] %v180
              $region41: #{post_activation.1} parent=35 // loop_footer
                %s147 = sadd.s32 1, %s143
              $region42: #{post_activation.1} parent=35 // loop_footer_branch
                %142 = sbr.rel target = $region38
              $region43: #{post_activation.1} parent=35 // loop_exit
                _
            $region36: #{post_activation.1} parent=31 // pred_fallthru
              _
            // Predicated region
            $region44: #{post_activation.1} parent=31 // pred_check
              _
            $region45: #{post_activation.1} parent=31 // pred_check_branch
              %183 = sbr.rel target = $region47
            $region46: #{post_activation.1} parent=31 // pred_region
              _
            $region47: #{post_activation.1} parent=31 // pred_fallthru
              _
          $region32: #{post_activation.1} parent=27 // pred_fallthru
            _
          %184 = vnop
        $region28: #{post_activation.1} parent=23 // pred_fallthru
          _
      $region24: #{post_activation.1} parent=5 // pred_fallthru
        _
      %p185 = scmp.le.s32.totalorder 1, %s9
      %p186 = scmp.lt.s32.totalorder %s9, 3
      %p187 = pnand %p185, %p186
      %p188 = pneg %p187
      // Predicated region
      $region48: #{post_activation.1} parent=5 // pred_check
        _
      $region49: #{post_activation.1} parent=5 // pred_check_branch
        %190 = sbr.rel (%p187) target = $region51
      $region50: #{post_activation.1} parent=5 // pred_region
        %s191 = ssub.s32 %s9, 1
        %s192 = sand.u32 %s22, 1
        %s193 = sand.u32 %s22, 1
        %s194 = smul.addr %s193, 128
        %s195 = scalar_lea.vmem [#allocation2], %s194
        // Predicated region
        $region52: #{post_activation.1} parent=50 // pred_check
          %p196 = pneg %p35
        $region53: #{post_activation.1} parent=50 // pred_check_branch
          %198 = sbr.rel (%p196) target = $region55
        $region54: #{post_activation.1} parent=50 // pred_region
          _
        $region55: #{post_activation.1} parent=50 // pred_fallthru
          _
        %s199 = sand.u32 %s22, 1
        %s200 = sand.u32 %s22, 1
        %s201 = smul.addr %s200, 128
        %s202 = scalar_lea.vmem [#allocation2], %s201
        %p203 = pneg %p35
        %p204 = pneg %p32
        %p205 = pneg %p56
        %p206 = pneg %p53
        %p207 = pneg %p77
        %p208 = pneg %p74
        %p209 = pneg %p103
        %p210 = pneg %p100
        %s211 = sand.u32 %s90, 1
        %s212 = sand.u32 %s90, 1
        %s213 = smul.addr %s212, 128
        %s214 = scalar_lea.vmem [#allocation3], %s213
        %v215 = vld [vmem:[%s195] sm:$0xff]
        %v216 = vld [vmem:[%s195 + $0x8] sm:$0xff]
        %v217 = vld [vmem:[%s195 + $0x10] sm:$0xff]
        %v218 = vld [vmem:[%s195 + $0x18] sm:$0xff]
        %v219 = vld [vmem:[%s195 + $0x20] sm:$0xff]
        %v220 = vld [vmem:[%s195 + $0x28] sm:$0xff]
        %v221 = vld [vmem:[%s195 + $0x30] sm:$0xff]
        %v222 = vld [vmem:[%s195 + $0x38] sm:$0xff]
        %v223 = vld [vmem:[%s195 + $0x40] sm:$0xff]
        %v224 = vld [vmem:[%s195 + $0x48] sm:$0xff]
        %v225 = vld [vmem:[%s195 + $0x50] sm:$0xff]
        %v226 = vld [vmem:[%s195 + $0x58] sm:$0xff]
        %v227 = vld [vmem:[%s195 + $0x60] sm:$0xff]
        %v228 = vld [vmem:[%s195 + $0x68] sm:$0xff]
        %v229 = vld [vmem:[%s195 + $0x70] sm:$0xff]
        %v230 = vld [vmem:[%s195 + $0x78] sm:$0xff]
        %v231 = vadd.f32 %v215, %v216
        %v232 = vadd.f32 %v231, %v217
        %v233 = vadd.f32 %v232, %v218
        %v234 = vadd.f32 %v233, %v219
        %v235 = vadd.f32 %v234, %v220
        %v236 = vadd.f32 %v235, %v221
        %v237 = vadd.f32 %v236, %v222
        %238 = vadd.xlane.f32.xlu0 %v237
        %v239 = vpop.xlane.xlu0 %238
        %v240 = vadd.f32 %v223, %v224
        %v241 = vadd.f32 %v240, %v225
        %v242 = vadd.f32 %v241, %v226
        %v243 = vadd.f32 %v242, %v227
        %v244 = vadd.f32 %v243, %v228
        %v245 = vadd.f32 %v244, %v229
        %v246 = vadd.f32 %v245, %v230
        %247 = vadd.xlane.f32.xlu0 %v246
        %v248 = vpop.xlane.xlu0 %247
        %v249 = vadd.f32 %v239, %v248
        %v250 = vmul.f32 %v249, 0.00048828125
        %v251 = vsub.f32 %v215, %v250
        %v252 = vsub.f32 %v216, %v250
        %v253 = vsub.f32 %v217, %v250
        %v254 = vsub.f32 %v218, %v250
        %v255 = vsub.f32 %v219, %v250
        %v256 = vsub.f32 %v220, %v250
        %v257 = vsub.f32 %v221, %v250
        %v258 = vsub.f32 %v222, %v250
        %v259 = vsub.f32 %v223, %v250
        %v260 = vsub.f32 %v224, %v250
        %v261 = vsub.f32 %v225, %v250
        %v262 = vsub.f32 %v226, %v250
        %v263 = vsub.f32 %v227, %v250
        %v264 = vsub.f32 %v228, %v250
        %v265 = vsub.f32 %v229, %v250
        %v266 = vsub.f32 %v230, %v250
        %v267 = vmul.f32 %v251, %v251
        %v268 = vmul.f32 %v252, %v252
        %v269 = vmul.f32 %v253, %v253
        %v270 = vmul.f32 %v254, %v254
        %v271 = vmul.f32 %v255, %v255
        %v272 = vmul.f32 %v256, %v256
        %v273 = vmul.f32 %v257, %v257
        %v274 = vmul.f32 %v258, %v258
        %v275 = vmul.f32 %v259, %v259
        %v276 = vmul.f32 %v260, %v260
        %v277 = vmul.f32 %v261, %v261
        %v278 = vmul.f32 %v262, %v262
        %v279 = vmul.f32 %v263, %v263
        %v280 = vmul.f32 %v264, %v264
        %v281 = vmul.f32 %v265, %v265
        %v282 = vmul.f32 %v266, %v266
        %v283 = vadd.f32 %v267, %v268
        %v284 = vadd.f32 %v283, %v269
        %v285 = vadd.f32 %v284, %v270
        %v286 = vadd.f32 %v285, %v271
        %v287 = vadd.f32 %v286, %v272
        %v288 = vadd.f32 %v287, %v273
        %v289 = vadd.f32 %v288, %v274
        %290 = vadd.xlane.f32.xlu0 %v289
        %v291 = vpop.xlane.xlu0 %290
        %v292 = vadd.f32 %v275, %v276
        %v293 = vadd.f32 %v292, %v277
        %v294 = vadd.f32 %v293, %v278
        %v295 = vadd.f32 %v294, %v279
        %v296 = vadd.f32 %v295, %v280
        %v297 = vadd.f32 %v296, %v281
        %v298 = vadd.f32 %v297, %v282
        %299 = vadd.xlane.f32.xlu0 %v298
        %v300 = vpop.xlane.xlu0 %299
        %v301 = vadd.f32 %v291, %v300
        %v302 = vmul.f32 %v301, 0.00048828125
        %s303 = smul.u32 %s14, 8
        %s304 = scalar_lea.vmem %s1, %s303
        %v305 = vld [vmem:[%s304] sm:$0xff]
        %s306 = scalar_lea.vmem %s2, %s303
        %v307 = vld [vmem:[%s306] sm:$0xff]
        %v308 = vadd.f32 %v302, 1e-05
        %v309 = vrsqrt.pop %v308
        %v310 = vmul.f32 %v305, %v309
        %v311 = vmul.f32 %v250, %v310
        %v312 = vsub.f32 %v307, %v311
        %314 = vset.pattern.permute.xlu0 0
        %315 = vperm.xlu0 %314, %v310
        %v316 = vpop.permute.xlu0 %315
        %v318 = vmul.f32 %v215, %v316
        %v319 = vmul.f32 %v216, %v316
        %v320 = vmul.f32 %v217, %v316
        %v321 = vmul.f32 %v218, %v316
        %v322 = vmul.f32 %v219, %v316
        %v323 = vmul.f32 %v220, %v316
        %v324 = vmul.f32 %v221, %v316
        %v325 = vmul.f32 %v222, %v316
        %v326 = vmul.f32 %v223, %v316
        %v327 = vmul.f32 %v224, %v316
        %v328 = vmul.f32 %v225, %v316
        %v329 = vmul.f32 %v226, %v316
        %v330 = vmul.f32 %v227, %v316
        %v331 = vmul.f32 %v228, %v316
        %v332 = vmul.f32 %v229, %v316
        %v333 = vmul.f32 %v230, %v316
        %335 = vset.pattern.permute.xlu0 0
        %336 = vperm.xlu0 %335, %v312
        %v337 = vpop.permute.xlu0 %336
        %v339 = vadd.f32 %v318, %v337
        %v340 = vadd.f32 %v319, %v337
        %v341 = vadd.f32 %v320, %v337
        %v342 = vadd.f32 %v321, %v337
        %v343 = vadd.f32 %v322, %v337
        %v344 = vadd.f32 %v323, %v337
        %v345 = vadd.f32 %v324, %v337
        %v346 = vadd.f32 %v325, %v337
        %v347 = vadd.f32 %v326, %v337
        %v348 = vadd.f32 %v327, %v337
        %v349 = vadd.f32 %v328, %v337
        %v350 = vadd.f32 %v329, %v337
        %v351 = vadd.f32 %v330, %v337
        %v352 = vadd.f32 %v331, %v337
        %v353 = vadd.f32 %v332, %v337
        %v354 = vadd.f32 %v333, %v337
        %v355 = vmax.f32 %v339, 0.0
        %v356 = vmax.f32 %v340, 0.0
        %v357 = vmax.f32 %v341, 0.0
        %v358 = vmax.f32 %v342, 0.0
        %v359 = vmax.f32 %v343, 0.0
        %v360 = vmax.f32 %v344, 0.0
        %v361 = vmax.f32 %v345, 0.0
        %v362 = vmax.f32 %v346, 0.0
        %v363 = vmax.f32 %v347, 0.0
        %v364 = vmax.f32 %v348, 0.0
        %v365 = vmax.f32 %v349, 0.0
        %v366 = vmax.f32 %v350, 0.0
        %v367 = vmax.f32 %v351, 0.0
        %v368 = vmax.f32 %v352, 0.0
        %v369 = vmax.f32 %v353, 0.0
        %v370 = vmax.f32 %v354, 0.0
        %371 = vst [vmem:[%s214] sm:$0xff] %v355
        %372 = vst [vmem:[%s214 + $0x8] sm:$0xff] %v356
        %373 = vst [vmem:[%s214 + $0x10] sm:$0xff] %v357
        %374 = vst [vmem:[%s214 + $0x18] sm:$0xff] %v358
        %375 = vst [vmem:[%s214 + $0x20] sm:$0xff] %v359
        %376 = vst [vmem:[%s214 + $0x28] sm:$0xff] %v360
        %377 = vst [vmem:[%s214 + $0x30] sm:$0xff] %v361
        %378 = vst [vmem:[%s214 + $0x38] sm:$0xff] %v362
        %379 = vst [vmem:[%s214 + $0x40] sm:$0xff] %v363
        %380 = vst [vmem:[%s214 + $0x48] sm:$0xff] %v364
        %381 = vst [vmem:[%s214 + $0x50] sm:$0xff] %v365
        %382 = vst [vmem:[%s214 + $0x58] sm:$0xff] %v366
        %383 = vst [vmem:[%s214 + $0x60] sm:$0xff] %v367
        %384 = vst [vmem:[%s214 + $0x68] sm:$0xff] %v368
        %385 = vst [vmem:[%s214 + $0x70] sm:$0xff] %v369
        %386 = vst [vmem:[%s214 + $0x78] sm:$0xff] %v370
        %s387 = sand.u32 %s90, 1
        %s388 = sand.u32 %s90, 1
        %s389 = smul.addr %s388, 128
        %s390 = scalar_lea.vmem [#allocation3], %s389
        // Predicated region
        $region56: #{post_activation.1} parent=50 // pred_check
          %p391 = pneg %p100
        $region57: #{post_activation.1} parent=50 // pred_check_branch
          %393 = sbr.rel (%p391) target = $region59
        $region58: #{post_activation.1} parent=50 // pred_region
          %s394 = smul.addr %s14, 8
          %s395 = smul.addr %s394, 8
          %s396 = scalar_lea.vmem %s3, %s395
          // Predicated region
          $region60: #{post_activation.1} parent=58 // pred_check
            _
          $region61: #{post_activation.1} parent=58 // pred_check_branch
            %398 = sbr.rel (0) target = $region63
          $region62: #{post_activation.1} parent=58 // pred_region
            // Predicated region
            $region64: #{post_activation.1} parent=62 // pred_check
              _
            $region65: #{post_activation.1} parent=62 // pred_check_branch
              %400 = sbr.rel (0) target = $region67
            $region66: #{post_activation.1} parent=62 // pred_region
              loop: start=0, step=1, limit=1
              $region68: #{post_activation.1} parent=66 // loop_pre_header
                _
              $region69: #{post_activation.1} parent=66 // loop_header
                %s402 = sphi 0, %s406
                %p403 = scmp.ge.s32.totalorder %s402, 1
                %s407 = sphi %s390, %s390
                %s408 = sphi %s396, %s396
              $region70: #{post_activation.1} parent=66 // loop_header_branch
                %405 = sbr.rel (%p403) target = $region74
              $region71: #{post_activation.1} parent=66 // loop_body
                %v409 = vld [vmem:[%s407] sm:$0xff]
                %410 = vst [vmem:[%s408] sm:$0xff] %v409
                %v411 = vld [vmem:[%s407 + $0x8] sm:$0xff]
                %412 = vst [vmem:[%s408 + $0x8] sm:$0xff] %v411
                %v413 = vld [vmem:[%s407 + $0x10] sm:$0xff]
                %414 = vst [vmem:[%s408 + $0x10] sm:$0xff] %v413
                %v415 = vld [vmem:[%s407 + $0x18] sm:$0xff]
                %416 = vst [vmem:[%s408 + $0x18] sm:$0xff] %v415
                %v417 = vld [vmem:[%s407 + $0x20] sm:$0xff]
                %418 = vst [vmem:[%s408 + $0x20] sm:$0xff] %v417
                %v419 = vld [vmem:[%s407 + $0x28] sm:$0xff]
                %420 = vst [vmem:[%s408 + $0x28] sm:$0xff] %v419
                %v421 = vld [vmem:[%s407 + $0x30] sm:$0xff]
                %422 = vst [vmem:[%s408 + $0x30] sm:$0xff] %v421
                %v423 = vld [vmem:[%s407 + $0x38] sm:$0xff]
                %424 = vst [vmem:[%s408 + $0x38] sm:$0xff] %v423
                %v425 = vld [vmem:[%s407 + $0x40] sm:$0xff]
                %426 = vst [vmem:[%s408 + $0x80] sm:$0xff] %v425
                %v427 = vld [vmem:[%s407 + $0x48] sm:$0xff]
                %428 = vst [vmem:[%s408 + $0x88] sm:$0xff] %v427
                %v429 = vld [vmem:[%s407 + $0x50] sm:$0xff]
                %430 = vst [vmem:[%s408 + $0x90] sm:$0xff] %v429
                %v431 = vld [vmem:[%s407 + $0x58] sm:$0xff]
                %432 = vst [vmem:[%s408 + $0x98] sm:$0xff] %v431
                %v433 = vld [vmem:[%s407 + $0x60] sm:$0xff]
                %434 = vst [vmem:[%s408 + $0xa0] sm:$0xff] %v433
                %v435 = vld [vmem:[%s407 + $0x68] sm:$0xff]
                %436 = vst [vmem:[%s408 + $0xa8] sm:$0xff] %v435
                %v437 = vld [vmem:[%s407 + $0x70] sm:$0xff]
                %438 = vst [vmem:[%s408 + $0xb0] sm:$0xff] %v437
                %v439 = vld [vmem:[%s407 + $0x78] sm:$0xff]
                %440 = vst [vmem:[%s408 + $0xb8] sm:$0xff] %v439
              $region72: #{post_activation.1} parent=66 // loop_footer
                %s406 = sadd.s32 1, %s402
              $region73: #{post_activation.1} parent=66 // loop_footer_branch
                %401 = sbr.rel target = $region69
              $region74: #{post_activation.1} parent=66 // loop_exit
                _
            $region67: #{post_activation.1} parent=62 // pred_fallthru
              _
            // Predicated region
            $region75: #{post_activation.1} parent=62 // pred_check
              _
            $region76: #{post_activation.1} parent=62 // pred_check_branch
              %442 = sbr.rel target = $region78
            $region77: #{post_activation.1} parent=62 // pred_region
              _
            $region78: #{post_activation.1} parent=62 // pred_fallthru
              _
          $region63: #{post_activation.1} parent=58 // pred_fallthru
            _
          %443 = vnop
        $region59: #{post_activation.1} parent=50 // pred_fallthru
          _
      $region51: #{post_activation.1} parent=5 // pred_fallthru
        _
      %p444 = scmp.le.s32.totalorder 2, %s9
      // Predicated region
      $region79: #{post_activation.1} parent=5 // pred_check
        %p445 = pneg %p444
      $region80: #{post_activation.1} parent=5 // pred_check_branch
        %447 = sbr.rel (%p445) target = $region82
      $region81: #{post_activation.1} parent=5 // pred_region
        %s448 = ssub.s32 %s9, 2
        // Predicated region
        $region83: #{post_activation.1} parent=81 // pred_check
          %p449 = pneg %p106
        $region84: #{post_activation.1} parent=81 // pred_check_branch
          %451 = sbr.rel (%p449) target = $region86
        $region85: #{post_activation.1} parent=81 // pred_region
          %s452 = sand.u32 %s91, 1
          %s453 = sand.u32 %s91, 1
          %s454 = smul.addr %s453, 128
          %s455 = scalar_lea.vmem [#allocation3], %s454
        $region86: #{post_activation.1} parent=81 // pred_fallthru
          _
      $region82: #{post_activation.1} parent=5 // pred_fallthru
        _
    $region6: #{post_activation.1} parent=1 // loop_footer
      %s13 = sadd.s32 1, %s9
    $region7: #{post_activation.1} parent=1 // loop_footer_branch
      %8 = sbr.rel target = $region3
    $region8: #{post_activation.1} parent=1 // loop_exit
      _

</llo_original>
